<compile_context>
chip_gen: v7x
topology: tpu7x:2x2x1
jax: 0.10.0
libtpu: 0.0.40
codegen_flags: <defaults>
</compile_context>

<pallas_src>
import jax
import jax.numpy as jnp
from jax import lax
from jax.experimental import pallas as pl
from jax.experimental.pallas import tpu as pltpu


def _embbag_fc_kernel(tok_ids_ref, tile_lo_ref, tile_hi_ref,   # SMEM scalar-prefetch
                      starts_ref, ends_ref, inv_ref,           # (TB, 1) per-bag metadata
                      emb_hbm,                                  # (V_pad, D_pad) f32, HBM
                      w_ref, b_ref,                             # (D_pad, C_pad), (1, C_pad)
                      out_ref,                                  # (TB, C_pad) output tile
                      gather_buf,                               # (TT, D_pad) f32 scratch
                      acc_ref,                                  # (TB, D_pad) f32 accumulator
                      gather_sem):                              # DMA semaphore
    i = pl.program_id(0)          # bag-tile index
    kt = pl.program_id(1)         # token-tile index (reduction axis)
    TT = gather_buf.shape[0]

    @pl.when(kt == 0)
    def _init():
        acc_ref[...] = jnp.zeros_like(acc_ref)

    t0 = kt * TT
    # Data-dependent skip: does token tile [t0, t0+TT) overlap this bag tile's span?
    overlap = (tile_lo_ref[i] < t0 + TT) & (tile_hi_ref[i] > t0)

    @pl.when(overlap)
    def _accumulate():
        # ---- gather TT embedding rows from HBM (ids pre-clamped to [0, V-1]) --------
        def _issue(t, carry):
            row = tok_ids_ref[t0 + t]
            pltpu.make_async_copy(emb_hbm.at[row], gather_buf.at[t], gather_sem).start()
            return carry
        lax.fori_loop(0, TT, _issue, 0)

        # ---- build the segment-mean matrix while the DMAs are in flight -------------
        # seg[b, t] = 1/len(b) if global token position (t0 + t) belongs to bag b.
        pos = t0 + lax.broadcasted_iota(jnp.int32, (1, TT), 1)          # (1, TT)
        in_bag = (pos >= starts_ref[...]) & (pos < ends_ref[...])        # (TB, TT)
        seg = jnp.where(in_bag, inv_ref[...], 0.0)                       # (TB, TT) f32

        def _wait(t, carry):
            row = tok_ids_ref[t0 + t]
            pltpu.make_async_copy(emb_hbm.at[row], gather_buf.at[t], gather_sem).wait()
            return carry
        lax.fori_loop(0, TT, _wait, 0)

        # ---- mean-pool this token tile into the per-bag accumulator (MXU) -----------
        acc_ref[...] += jnp.dot(seg, gather_buf[...],
                                preferred_element_type=jnp.float32)

    # ---- finalize: Linear layer, one lane-dense (TB, C_pad) store per bag tile ------
    @pl.when(kt == pl.num_programs(1) - 1)
    def _finalize():
        logits = jnp.dot(acc_ref[...], w_ref[...],
                         preferred_element_type=jnp.float32) + b_ref[...]
        out_ref[...] = logits.astype(out_ref.dtype)


def text_classification_forward(text, offsets, emb_tbl, fc_w, fc_b,
                                *, bag_tile=128, tok_tile=128):
    """text: [T] int token ids, offsets: [B] int bag starts,
       emb_tbl: [V, D], fc_w: [C, D], fc_b: [C]  ->  logits [B, C]."""
    T = int(text.shape[0])
    B = int(offsets.shape[0])
    V, D = emb_tbl.shape
    C = fc_w.shape[0]

    def rup(x, m):
        return (x + m - 1) // m * m

    TT = tok_tile                                   # tokens per grid step (mult of 8)
    TB = min(bag_tile, rup(max(B, 1), 8))           # bags per grid step (mult of 8)
    B_pad = rup(max(B, 1), TB)
    T_pad = rup(max(T, 1), TT)
    V_pad = rup(V, 8)
    D_pad = rup(D, 128)
    C_pad = rup(C, 128)
    nbt = B_pad // TB

    starts = offsets.astype(jnp.int32)
    ends = jnp.concatenate([starts[1:], jnp.array([T], jnp.int32)])
    lens = ends - starts
    inv = jnp.where(lens > 0,
                    1.0 / jnp.maximum(lens, 1).astype(jnp.float32),
                    0.0)                            # empty bag -> zero vector (torch 'mean')

    # Padded bags get the empty range [T, T) -> contribute nothing.
    starts_p = jnp.full((B_pad,), T, jnp.int32).at[:B].set(starts)
    ends_p = jnp.full((B_pad,), T, jnp.int32).at[:B].set(ends)
    inv_p = jnp.zeros((B_pad,), jnp.float32).at[:B].set(inv)

    # Per-bag-tile token-range for the in-kernel overlap skip (padded bags excluded).
    valid = jnp.arange(B_pad) < B
    tile_lo = jnp.where(valid, starts_p, T).reshape(nbt, TB).min(axis=1).astype(jnp.int32)
    tile_hi = jnp.where(valid, ends_p, 0).reshape(nbt, TB).max(axis=1).astype(jnp.int32)

    # Token ids, clamped into range (safe HBM DMA) and zero-padded.
    # NOTE: out-of-range ids contribute row 0 instead of raising like torch EmbeddingBag.
    tok_ids = jnp.zeros((T_pad,), jnp.int32).at[:T].set(
        jnp.clip(text.astype(jnp.int32), 0, V - 1))

    # Zero-padded parameters (lane-dense layouts). The table stays in HBM.
    emb_p = jnp.zeros((V_pad, D_pad), jnp.float32).at[:V, :D].set(emb_tbl.astype(jnp.float32))
    w_t_p = jnp.zeros((D_pad, C_pad), jnp.float32).at[:D, :C].set(fc_w.astype(jnp.float32).T)
    b_p = jnp.zeros((1, C_pad), jnp.float32).at[0, :C].set(fc_b.astype(jnp.float32))

    starts_2d = starts_p.reshape(B_pad, 1)
    ends_2d = ends_p.reshape(B_pad, 1)
    inv_2d = inv_p.reshape(B_pad, 1)

    grid = (nbt, T_pad // TT)

    out = pl.pallas_call(
        _embbag_fc_kernel,
        out_shape=jax.ShapeDtypeStruct((B_pad, C_pad), jnp.float32),
        grid_spec=pltpu.PrefetchScalarGridSpec(
            num_scalar_prefetch=3,                  # tok_ids, tile_lo, tile_hi -> SMEM
            grid=grid,
            in_specs=[
                pl.BlockSpec((TB, 1), lambda i, kt, tok, lo, hi: (i, 0)),     # bag starts
                pl.BlockSpec((TB, 1), lambda i, kt, tok, lo, hi: (i, 0)),     # bag ends
                pl.BlockSpec((TB, 1), lambda i, kt, tok, lo, hi: (i, 0)),     # 1/len
                pl.BlockSpec(memory_space=pl.ANY),                            # emb table (HBM)
                pl.BlockSpec((D_pad, C_pad), lambda i, kt, tok, lo, hi: (0, 0)),  # fc W^T
                pl.BlockSpec((1, C_pad), lambda i, kt, tok, lo, hi: (0, 0)),      # fc bias
            ],
            out_specs=pl.BlockSpec((TB, C_pad), lambda i, kt, tok, lo, hi: (i, 0)),
            scratch_shapes=[
                pltpu.VMEM((TT, D_pad), jnp.float32),    # gathered embedding rows
                pltpu.VMEM((TB, D_pad), jnp.float32),    # pooled-sum accumulator
                pltpu.SemaphoreType.DMA(()),             # gather completion semaphore
            ],
        ),
        compiler_params=pltpu.CompilerParams(
            dimension_semantics=("parallel", "arbitrary")),
    )(tok_ids, tile_lo, tile_hi, starts_2d, ends_2d, inv_2d, emb_p, w_t_p, b_p)

    return out[:B, :C]


if __name__ == "__main__":
    # Small synthetic shapes consistent with the module.
    vocab_size, embed_dim, num_class = 64, 32, 4
    key = jax.random.PRNGKey(0)
    k_emb, k_w, k_txt = jax.random.split(key, 3)

    initrange = 0.5
    emb_tbl = jax.random.uniform(k_emb, (vocab_size, embed_dim), jnp.float32,
                                 -initrange, initrange)
    fc_w = jax.random.uniform(k_w, (num_class, embed_dim), jnp.float32,
                              -initrange, initrange)
    fc_b = jnp.zeros((num_class,), jnp.float32)

    # batch of 2 bags: lengths 5 and 3, flat token stream of 8 ids
    text = jax.random.randint(k_txt, (8,), 0, vocab_size, dtype=jnp.int32)
    offsets = jnp.array([0, 5], dtype=jnp.int32)

    out = text_classification_forward(text, offsets, emb_tbl, fc_w, fc_b)
    out = jax.block_until_ready(out)

    # pure-JAX reference (EmbeddingBag mean + Linear)
    pooled0 = emb_tbl[text[0:5]].mean(0)
    pooled1 = emb_tbl[text[5:8]].mean(0)
    ref = jnp.stack([pooled0, pooled1]) @ fc_w.T + fc_b
    assert jnp.allclose(out, ref, atol=1e-5, rtol=1e-5), (out, ref)

    print("KERNEL_OK")
</pallas_src>

<mosaic_0001>
module attributes {stable_mosaic.version = 11 : i64} {
  func.func @_embbag_fc_kernel(%arg0: i32, %arg1: i32, %arg2: memref<128xi32, #tpu.memory_space<smem>>, %arg3: memref<1xi32, #tpu.memory_space<smem>>, %arg4: memref<1xi32, #tpu.memory_space<smem>>, %arg5: memref<8x1xi32, #tpu.memory_space<vmem>>, %arg6: memref<8x1xi32, #tpu.memory_space<vmem>>, %arg7: memref<8x1xf32, #tpu.memory_space<vmem>>, %arg8: memref<64x128xf32, #tpu.memory_space<any>>, %arg9: memref<128x128xf32, #tpu.memory_space<vmem>>, %arg10: memref<1x128xf32, #tpu.memory_space<vmem>>, %arg11: memref<8x128xf32, #tpu.memory_space<vmem>>, %arg12: memref<128x128xf32, #tpu.memory_space<vmem>>, %arg13: memref<8x128xf32, #tpu.memory_space<vmem>>, %arg14: memref<!tpu.dma_semaphore, #tpu.memory_space<semaphore_mem>>) attributes {dimension_semantics = [#tpu.dimension_semantics<parallel>, #tpu.dimension_semantics<arbitrary>], iteration_bounds = array<i64: 1, 1>, scalar_prefetch = 3 : i64, scratch_operands = 3 : i64, tpu.core_type = #tpu.core_type<tc>, window_params = [{transform_indices = @transform_0, window_bounds = array<i64: 8, 1>}, {transform_indices = @transform_1, window_bounds = array<i64: 8, 1>}, {transform_indices = @transform_2, window_bounds = array<i64: 8, 1>}, {}, {pipeline_mode = #tpu.pipeline_mode<synchronous>, transform_indices = @transform_4, window_bounds = array<i64: 128, 128>}, {pipeline_mode = #tpu.pipeline_mode<synchronous>, transform_indices = @transform_5, window_bounds = array<i64: 1, 128>}, {transform_indices = @transform_6, window_bounds = array<i64: 8, 128>}]} {
    %c0_i32 = arith.constant 0 : i32
    %0 = arith.cmpi eq, %arg1, %c0_i32 : i32
    %1 = arith.extui %0 : i1 to i32
    %c0_i32_0 = arith.constant 0 : i32
    %2 = arith.cmpi ne, %1, %c0_i32_0 : i32
    scf.if %2 {
      %cst = arith.constant 0.000000e+00 : f32
      %17 = vector.broadcast %cst : f32 to vector<8x128xf32>
      %c0 = arith.constant 0 : index
      %c0_5 = arith.constant 0 : index
      %18 = vector.load %arg13[%c0, %c0_5] : memref<8x128xf32, #tpu.memory_space<vmem>>, vector<8x128xf32>
      tpu.vector_store %arg13[%c0, %c0_5], %17 {strides = array<i32>} : memref<8x128xf32, #tpu.memory_space<vmem>>, vector<8x128xf32>,
    } else {
    }
    %c128_i32 = arith.constant 128 : i32
    %3 = arith.muli %arg1, %c128_i32 : i32
    %4 = arith.index_cast %arg0 : i32 to index
    %5 = memref.load %arg3[%4] : memref<1xi32, #tpu.memory_space<smem>>
    %c128_i32_1 = arith.constant 128 : i32
    %6 = arith.addi %3, %c128_i32_1 : i32
    %7 = arith.cmpi slt, %5, %6 : i32
    %8 = arith.index_cast %arg0 : i32 to index
    %9 = memref.load %arg4[%8] : memref<1xi32, #tpu.memory_space<smem>>
    %10 = arith.cmpi sgt, %9, %3 : i32
    %11 = arith.andi %7, %10 : i1
    %12 = arith.extui %11 : i1 to i32
    %c0_i32_2 = arith.constant 0 : i32
    %13 = arith.cmpi ne, %12, %c0_i32_2 : i32
    scf.if %13 {
      %c0_i32_5 = arith.constant 0 : i32
      %c128_i32_6 = arith.constant 128 : i32
      %17 = arith.addi %c0_i32_5, %c128_i32_6 : i32
      %c1_i32 = arith.constant 1 : i32
      scf.for %arg15 = %c0_i32_5 to %17 step %c1_i32  : i32 {
        %41 = arith.addi %3, %arg15 : i32
        %42 = arith.index_cast %41 : i32 to index
        %43 = memref.load %arg2[%42] : memref<128xi32, #tpu.memory_space<smem>>
        %c0_i32_24 = arith.constant 0 : i32
        %44 = tpu.memref_slice %arg8[%43, %c0_i32_24] : memref<64x128xf32, #tpu.memory_space<any>> -> memref<1x128xf32, #tpu.memory_space<any>>
        %45 = tpu.memref_squeeze %44 : memref<1x128xf32, #tpu.memory_space<any>> -> memref<128xf32, #tpu.memory_space<any>>
        %c0_i32_25 = arith.constant 0 : i32
        %46 = tpu.memref_slice %arg12[%arg15, %c0_i32_25] : memref<128x128xf32, #tpu.memory_space<vmem>> -> memref<1x128xf32, #tpu.memory_space<vmem>>
        %47 = tpu.memref_squeeze %46 : memref<1x128xf32, #tpu.memory_space<vmem>> -> memref<128xf32, #tpu.memory_space<vmem>>
        tpu.enqueue_dma source(%45 : memref<128xf32, #tpu.memory_space<any>>) target(%47 : memref<128xf32, #tpu.memory_space<vmem>>) target_semaphore(%arg14 : memref<!tpu.dma_semaphore, #tpu.memory_space<semaphore_mem>>)
      }
      %c128_i32_7 = arith.constant 128 : i32
      %18 = tpu.iota {dimensions = array<i32: 1>} : vector<1x128xi32>
      %19 = vector.broadcast %3 : i32 to vector<1x128xi32>
      %20 = arith.addi %19, %18 : vector<1x128xi32>
      %c0 = arith.constant 0 : index
      %c0_8 = arith.constant 0 : index
      %21 = vector.load %arg5[%c0, %c0_8] : memref<8x1xi32, #tpu.memory_space<vmem>>, vector<8x1xi32>
      %22 = vector.broadcast %20 : vector<1x128xi32> to vector<8x128xi32>
      %23 = vector.broadcast %21 : vector<8x1xi32> to vector<8x128xi32>
      %24 = arith.cmpi sge, %22, %23 : vector<8x128xi32>
      %c0_9 = arith.constant 0 : index
      %c0_10 = arith.constant 0 : index
      %25 = vector.load %arg6[%c0_9, %c0_10] : memref<8x1xi32, #tpu.memory_space<vmem>>, vector<8x1xi32>
      %26 = vector.broadcast %20 : vector<1x128xi32> to vector<8x128xi32>
      %27 = vector.broadcast %25 : vector<8x1xi32> to vector<8x128xi32>
      %28 = arith.cmpi slt, %26, %27 : vector<8x128xi32>
      %29 = arith.andi %24, %28 : vector<8x128xi1>
      %c0_11 = arith.constant 0 : index
      %c0_12 = arith.constant 0 : index
      %30 = vector.load %arg7[%c0_11, %c0_12] : memref<8x1xf32, #tpu.memory_space<vmem>>, vector<8x1xf32>
      %cst = arith.constant 0.000000e+00 : f32
      %31 = vector.shape_cast %30 : vector<8x1xf32> to vector<8x1xf32>
      %32 = vector.broadcast %31 : vector<8x1xf32> to vector<8x128xf32>
      %33 = vector.broadcast %cst : f32 to vector<8x128xf32>
      %34 = arith.select %29, %32, %33 : vector<8x128xi1>, vector<8x128xf32>
      %c0_i32_13 = arith.constant 0 : i32
      %c128_i32_14 = arith.constant 128 : i32
      %35 = arith.addi %c0_i32_13, %c128_i32_14 : i32
      %c1_i32_15 = arith.constant 1 : i32
      scf.for %arg15 = %c0_i32_13 to %35 step %c1_i32_15  : i32 {
        %41 = arith.addi %3, %arg15 : i32
        %42 = arith.index_cast %41 : i32 to index
        %43 = memref.load %arg2[%42] : memref<128xi32, #tpu.memory_space<smem>>
        %c0_i32_24 = arith.constant 0 : i32
        %44 = tpu.memref_slice %arg8[%43, %c0_i32_24] : memref<64x128xf32, #tpu.memory_space<any>> -> memref<1x128xf32, #tpu.memory_space<any>>
        %45 = tpu.memref_squeeze %44 : memref<1x128xf32, #tpu.memory_space<any>> -> memref<128xf32, #tpu.memory_space<any>>
        %c0_i32_25 = arith.constant 0 : i32
        %46 = tpu.memref_slice %arg12[%arg15, %c0_i32_25] : memref<128x128xf32, #tpu.memory_space<vmem>> -> memref<1x128xf32, #tpu.memory_space<vmem>>
        %47 = tpu.memref_squeeze %46 : memref<1x128xf32, #tpu.memory_space<vmem>> -> memref<128xf32, #tpu.memory_space<vmem>>
        tpu.wait_dma2 semaphore(%arg14 : memref<!tpu.dma_semaphore, #tpu.memory_space<semaphore_mem>>) src(%45 : memref<128xf32, #tpu.memory_space<any>>) dst(%47 : memref<128xf32, #tpu.memory_space<vmem>>)
      }
      %c128_i32_16 = arith.constant 128 : i32
      %c0_17 = arith.constant 0 : index
      %c0_18 = arith.constant 0 : index
      %36 = vector.load %arg13[%c0_17, %c0_18] : memref<8x128xf32, #tpu.memory_space<vmem>>, vector<8x128xf32>
      %c0_19 = arith.constant 0 : index
      %c0_20 = arith.constant 0 : index
      %37 = vector.load %arg12[%c0_19, %c0_20] : memref<128x128xf32, #tpu.memory_space<vmem>>, vector<128x128xf32>
      %cst_21 = arith.constant dense<0.000000e+00> : vector<8x128xf32>
      %38 = tpu.matmul %34, %37, %cst_21 {dimension_numbers = #tpu.dot_dimension_numbers<[1], [0], [0], [1], [0, 0, 1, 1], [], []>} : vector<8x128xf32>, vector<128x128xf32>, vector<8x128xf32> -> vector<8x128xf32>
      %39 = arith.addf %36, %38 : vector<8x128xf32>
      %c0_22 = arith.constant 0 : index
      %c0_23 = arith.constant 0 : index
      %40 = vector.load %arg13[%c0_22, %c0_23] : memref<8x128xf32, #tpu.memory_space<vmem>>, vector<8x128xf32>
      tpu.vector_store %arg13[%c0_22, %c0_23], %39 {strides = array<i32>} : memref<8x128xf32, #tpu.memory_space<vmem>>, vector<8x128xf32>,
    } else {
    }
    %c0_i32_3 = arith.constant 0 : i32
    %14 = arith.cmpi eq, %arg1, %c0_i32_3 : i32
    %15 = arith.extui %14 : i1 to i32
    %c0_i32_4 = arith.constant 0 : i32
    %16 = arith.cmpi ne, %15, %c0_i32_4 : i32
    scf.if %16 {
      %c0 = arith.constant 0 : index
      %c0_5 = arith.constant 0 : index
      %17 = vector.load %arg13[%c0, %c0_5] : memref<8x128xf32, #tpu.memory_space<vmem>>, vector<8x128xf32>
      %c0_6 = arith.constant 0 : index
      %c0_7 = arith.constant 0 : index
      %18 = vector.load %arg9[%c0_6, %c0_7] : memref<128x128xf32, #tpu.memory_space<vmem>>, vector<128x128xf32>
      %cst = arith.constant dense<0.000000e+00> : vector<8x128xf32>
      %19 = tpu.matmul %17, %18, %cst {dimension_numbers = #tpu.dot_dimension_numbers<[1], [0], [0], [1], [0, 0, 1, 1], [], []>} : vector<8x128xf32>, vector<128x128xf32>, vector<8x128xf32> -> vector<8x128xf32>
      %c0_8 = arith.constant 0 : index
      %c0_9 = arith.constant 0 : index
      %20 = vector.load %arg10[%c0_8, %c0_9] : memref<1x128xf32, #tpu.memory_space<vmem>>, vector<1x128xf32>
      %21 = vector.broadcast %20 : vector<1x128xf32> to vector<8x128xf32>
      %22 = arith.addf %19, %21 : vector<8x128xf32>
      %c0_10 = arith.constant 0 : index
      %c0_11 = arith.constant 0 : index
      %23 = vector.load %arg11[%c0_10, %c0_11] : memref<8x128xf32, #tpu.memory_space<vmem>>, vector<8x128xf32>
      tpu.vector_store %arg11[%c0_10, %c0_11], %22 {strides = array<i32>} : memref<8x128xf32, #tpu.memory_space<vmem>>, vector<8x128xf32>,
    } else {
    }
    return
  }
  func.func @transform_0(%arg0: i32, %arg1: i32, %arg2: memref<128xi32, #tpu.memory_space<smem>>, %arg3: memref<1xi32, #tpu.memory_space<smem>>, %arg4: memref<1xi32, #tpu.memory_space<smem>>) -> (i32, i32) {
    %c0_i32 = arith.constant 0 : i32
    %c0_i32_0 = arith.constant 0 : i32
    return %arg0, %c0_i32 : i32, i32
  }
  func.func @transform_1(%arg0: i32, %arg1: i32, %arg2: memref<128xi32, #tpu.memory_space<smem>>, %arg3: memref<1xi32, #tpu.memory_space<smem>>, %arg4: memref<1xi32, #tpu.memory_space<smem>>) -> (i32, i32) {
    %c0_i32 = arith.constant 0 : i32
    %c0_i32_0 = arith.constant 0 : i32
    return %arg0, %c0_i32 : i32, i32
  }
  func.func @transform_2(%arg0: i32, %arg1: i32, %arg2: memref<128xi32, #tpu.memory_space<smem>>, %arg3: memref<1xi32, #tpu.memory_space<smem>>, %arg4: memref<1xi32, #tpu.memory_space<smem>>) -> (i32, i32) {
    %c0_i32 = arith.constant 0 : i32
    %c0_i32_0 = arith.constant 0 : i32
    return %arg0, %c0_i32 : i32, i32
  }
  func.func @transform_4(%arg0: i32, %arg1: i32, %arg2: memref<128xi32, #tpu.memory_space<smem>>, %arg3: memref<1xi32, #tpu.memory_space<smem>>, %arg4: memref<1xi32, #tpu.memory_space<smem>>) -> (i32, i32) {
    %c0_i32 = arith.constant 0 : i32
    %c0_i32_0 = arith.constant 0 : i32
    %c0_i32_1 = arith.constant 0 : i32
    return %c0_i32, %c0_i32_0 : i32, i32
  }
  func.func @transform_5(%arg0: i32, %arg1: i32, %arg2: memref<128xi32, #tpu.memory_space<smem>>, %arg3: memref<1xi32, #tpu.memory_space<smem>>, %arg4: memref<1xi32, #tpu.memory_space<smem>>) -> (i32, i32) {
    %c0_i32 = arith.constant 0 : i32
    %c0_i32_0 = arith.constant 0 : i32
    %c0_i32_1 = arith.constant 0 : i32
    return %c0_i32, %c0_i32_0 : i32, i32
  }
  func.func @transform_6(%arg0: i32, %arg1: i32, %arg2: memref<128xi32, #tpu.memory_space<smem>>, %arg3: memref<1xi32, #tpu.memory_space<smem>>, %arg4: memref<1xi32, #tpu.memory_space<smem>>) -> (i32, i32) {
    %c0_i32 = arith.constant 0 : i32
    %c0_i32_0 = arith.constant 0 : i32
    return %arg0, %c0_i32 : i32, i32
  }
}

</mosaic_0001>

<llo_original>
// kernel: tpu_custom_call.1
$region0: #{tpu_custom_call.1}
  #allocation0 [shape = 'u32[]', space=smem, size = 0x4, offset = 0x4, fixed_abs, tag = 'smem constant byte address 0x4 - core index']
  #allocation1 [shape = 'u32[144,128]{1,0:T(1,128)}', space=vmem, size = 0x12000, scoped, tag = 'internal scratch']
  #allocation2 [shape = 'f32[128,128]{1,0:T(8,128)}', space=vmem, size = 0x10000, scoped, tag = 'scratch operand']
  #allocation3 [shape = 'f32[8,128]{1,0:T(8,128)}', space=vmem, size = 0x1000, scoped, tag = 'scratch operand']
  #allocation4 [shape = 's32[1]{0}', space=sflag, size = 0x4, scoped, tag = 'scratch operand']
  #allocation5 [shape = 's32[1]{0}', space=sflag, size = 0x4, scoped, tag = 'scoped memory for tpu_custom_call.1']
  #allocation6 [shape = 'u8[512]{0}', space=smem, size = 0x200, scoped, tag = 'prefetched SMEM operand 0']
  #allocation7 [shape = 's32[1]{0:T(128)S(6)}', space=smem, size = 0x200, scoped, tag = 'prefetched SMEM operand 1']
  #allocation8 [shape = 's32[1]{0:T(128)S(6)}', space=smem, size = 0x200, scoped, tag = 'prefetched SMEM operand 2']
  #allocation13 [shape = 's32[]', space=sflag, size = 0x4, offset = 0, fixed_abs, tag = 'sflag constant byte address 0x0 - dummy sync flag']
  #allocation14 [shape = 's32[]', space=sflag, size = 0x4, offset = 0, fixed_abs, tag = 'sflag constant byte address 0x0 - dummy sync flag']
  #allocation15 [shape = 'u32[]', space=smem, size = 0x4, offset = 0x44, fixed_abs, tag = 'smem constant byte address 0x44 - assertion arg 0']
  #allocation16 [shape = 'u32[]', space=smem, size = 0x4, offset = 0x48, fixed_abs, tag = 'smem constant byte address 0x48 - assertion arg 1']
  %s0 = inlined_call_operand.vmem [shape: s32[128], index: 0, kind: input, shape index: {}]
  %s1 = inlined_call_operand.<no memory space> [shape: s32[1], index: 1, kind: input, shape index: {}]
  %s2 = inlined_call_operand.<no memory space> [shape: s32[1], index: 2, kind: input, shape index: {}]
  %s3 = inlined_call_operand.vmem [shape: s32[8,1], index: 3, kind: input, shape index: {}]
  %s4 = inlined_call_operand.vmem [shape: s32[8,1], index: 4, kind: input, shape index: {}]
  %s5 = inlined_call_operand.vmem [shape: f32[8,1], index: 5, kind: input, shape index: {}]
  %s6 = inlined_call_operand.hbm [shape: f32[64,128], index: 6, kind: input, shape index: {}]
  %s7 = inlined_call_operand.hbm [shape: f32[128,128], index: 7, kind: input, shape index: {}]
  %s8 = inlined_call_operand.vmem [shape: f32[1,128], index: 8, kind: input, shape index: {}]
  %s9 = inlined_call_operand.hbm [shape: f32[8,128], index: 9, kind: output, shape index: {}]
  %s10 = sld [smem:[#allocation0]]
  $region64: #{tpu_custom_call.1} parent=0
    _
  %s12 = ssub.s32 1, %s10
  %s13 = scalar_select 0, %s12, %s10
  %s14 = sshll.u32 %s0, 4
  %s15 = int_to_ptr.vmem [resolvable:$true] %s14
  %17 = dma.vmem_to_smem %s15, 16, [#allocation6], [#allocation5]
  %18 = sst [smem:[#allocation7]] %s1
  %19 = sst [smem:[#allocation8]] %s2
  %20 = dma.done [#allocation5], 16
  %21 = sfence
  $region1: #{tpu_custom_call.1} parent=0
    #allocation9 [shape = 'u8[65536]{0}', space=vmem, size = 0x10000, scoped, tag = 'input window, operand 7, single buffered']
    #allocation10 [shape = 's32[1]{0}', space=sflag, size = 0x4, scoped, tag = 'scoped memory for tpu_custom_call.1']
    #allocation11 [shape = 's32[1]{0}', space=sflag, size = 0x4, scoped, tag = 'scoped memory for tpu_custom_call.1']
    #allocation12 [shape = 'u8[4096]{0}', space=vmem, size = 0x1000, scoped, tag = 'output window, operand 0, single buffered']
    %22 = vsyncpa [#allocation10], 0
    %23 = vsyncpa [#allocation11], 0
    // Predicated region
    $region2: #{tpu_custom_call.1} parent=1 // pred_check
      _
    $region3: #{tpu_custom_call.1} parent=1 // pred_check_branch
      %25 = sbr.rel (0) target = $region5
    $region4: #{tpu_custom_call.1} parent=1 // pred_region
      _
    $region5: #{tpu_custom_call.1} parent=1 // pred_fallthru
      _
    // Predicated region
    $region6: #{tpu_custom_call.1} parent=1 // pred_check
      _
    $region7: #{tpu_custom_call.1} parent=1 // pred_check_branch
      %27 = sbr.rel (0) target = $region9
    $region8: #{tpu_custom_call.1} parent=1 // pred_region
      _
    $region9: #{tpu_custom_call.1} parent=1 // pred_fallthru
      _
    // Predicated region
    $region10: #{tpu_custom_call.1} parent=1 // pred_check
      _
    $region11: #{tpu_custom_call.1} parent=1 // pred_check_branch
      %29 = sbr.rel (0) target = $region13
    $region12: #{tpu_custom_call.1} parent=1 // pred_region
      _
    $region13: #{tpu_custom_call.1} parent=1 // pred_fallthru
      _
    // Predicated region
    $region14: #{tpu_custom_call.1} parent=1 // pred_check
      _
    $region15: #{tpu_custom_call.1} parent=1 // pred_check_branch
      %31 = sbr.rel (0) target = $region17
    $region16: #{tpu_custom_call.1} parent=1 // pred_region
      %s33 = ssub.s32 2048, 2048
      %34 = vsyncadd [#allocation10], %s33
      %s35 = sshll.u32 [#allocation9], 4
      %s36 = int_to_ptr.vmem [resolvable:$true] %s35
      %41 = dma.hbm_to_vmem [thread:$0]  %s7, 2048, %s36, [#allocation10], 128, 128, 8
    $region17: #{tpu_custom_call.1} parent=1 // pred_fallthru
      _
    // Predicated region
    $region18: #{tpu_custom_call.1} parent=1 // pred_check
      _
    $region19: #{tpu_custom_call.1} parent=1 // pred_check_branch
      %43 = sbr.rel (0) target = $region21
    $region20: #{tpu_custom_call.1} parent=1 // pred_region
      _
    $region21: #{tpu_custom_call.1} parent=1 // pred_fallthru
      _
    // Predicated region
    $region22: #{tpu_custom_call.1} parent=1 // pred_check
      _
    $region23: #{tpu_custom_call.1} parent=1 // pred_check_branch
      %45 = sbr.rel (0) target = $region25
    $region24: #{tpu_custom_call.1} parent=1 // pred_region
      %46 = dma.done [#allocation10], 2048
    $region25: #{tpu_custom_call.1} parent=1 // pred_fallthru
      _
    %p47 = scmp.eq.s32.totalorder 0, 0
    // Predicated region
    $region26: #{tpu_custom_call.1} parent=1 // pred_check
      %p48 = pneg %p47
    $region27: #{tpu_custom_call.1} parent=1 // pred_check_branch
      %50 = sbr.rel (%p48) target = $region29
    $region28: #{tpu_custom_call.1} parent=1 // pred_region
      %51 = vst [vmem:[#allocation3] sm:$0xff] 0.0
    $region29: #{tpu_custom_call.1} parent=1 // pred_fallthru
      _
    %s52 = smul.u32 0, 128
    %s53 = sld [smem:[#allocation7]]
    %s54 = sadd.s32 %s52, 128
    %p55 = scmp.lt.s32.totalorder %s53, %s54
    %s56 = sld [smem:[#allocation8]]
    %p57 = scmp.gt.s32.totalorder %s56, %s52
    %p58 = pnand %p55, %p57
    %p59 = pneg %p58
    // Predicated region
    $region30: #{tpu_custom_call.1} parent=1 // pred_check
      _
    $region31: #{tpu_custom_call.1} parent=1 // pred_check_branch
      %61 = sbr.rel (%p58) target = $region33
    $region32: #{tpu_custom_call.1} parent=1 // pred_region
      loop: start=0, step=1, limit=128
      $region34: #{tpu_custom_call.1} parent=32 // loop_pre_header
        _
      $region35: #{tpu_custom_call.1} parent=32 // loop_header
        %s63 = sphi 0, %s67
        %p64 = scmp.ge.s32.totalorder %s63, 128
      $region36: #{tpu_custom_call.1} parent=32 // loop_header_branch
        %66 = sbr.rel (%p64) target = $region40
      $region37: #{tpu_custom_call.1} parent=32 // loop_body
        %s68 = sadd.s32 %s52, %s63
        %s69 = sld [smem:[#allocation6 + %s68]]
        %s70 = smul.addr %s69, 16
        %s71 = scalar_lea.hbm %s6, %s70
        %s72 = scalar_lea.vmem [#allocation2], %s63
        // Predicated region
        $region41: #{tpu_custom_call.1} parent=37 // pred_check
          _
        $region42: #{tpu_custom_call.1} parent=37 // pred_check_branch
          %74 = sbr.rel target = $region44
        $region43: #{tpu_custom_call.1} parent=37 // pred_region
          %75 = sst [smem:[#allocation15]] [#allocation14]
          %76 = sst [smem:[#allocation16]] [#allocation13]
        $region44: #{tpu_custom_call.1} parent=37 // pred_fallthru
          _
        %78 = shalt.err (0)
        %s80 = sshll.u32 %s72, 4
        %s81 = int_to_ptr.vmem [resolvable:$true] %s80
        %83 = dma.hbm_to_vmem [thread:$0]  %s71, 16, %s81, [#allocation4]
      $region38: #{tpu_custom_call.1} parent=32 // loop_footer
        %s67 = sadd.s32 1, %s63
      $region39: #{tpu_custom_call.1} parent=32 // loop_footer_branch
        %62 = sbr.rel target = $region35
      $region40: #{tpu_custom_call.1} parent=32 // loop_exit
        _
      %v84 = vlaneseq
      %v85 = vand.u32 %v84, 127
      %v86 = vstv %s52
      %v87 = vadd.s32 %v86, %v85
      %v88 = vld [vmem:[%s3] sm:$0xff]
      %89 = vset.pattern.permute.xlu0 0
      %90 = vperm.xlu0 %89, %v88
      %v91 = vpop.permute.xlu0 %90
      %vm92 = vcmp.ge.s32.totalorder %v87, %v91
      %v93 = vld [vmem:[%s4] sm:$0xff]
      %94 = vset.pattern.permute.xlu0 0
      %95 = vperm.xlu0 %94, %v93
      %v96 = vpop.permute.xlu0 %95
      %vm97 = vcmp.lt.s32.totalorder %v87, %v96
      %vm98 = vmand %vm92, %vm97
      %v99 = vld [vmem:[%s5] sm:$0xff]
      %101 = vset.pattern.permute.xlu0 0
      %102 = vperm.xlu0 %101, %v99
      %v103 = vpop.permute.xlu0 %102
      %v105 = vsel %vm98, %v103, 0.0
      loop: start=0, step=1, limit=128
      $region45: #{tpu_custom_call.1} parent=32 // loop_pre_header
        _
      $region46: #{tpu_custom_call.1} parent=32 // loop_header
        %s107 = sphi 0, %s111
        %p108 = scmp.ge.s32.totalorder %s107, 128
      $region47: #{tpu_custom_call.1} parent=32 // loop_header_branch
        %110 = sbr.rel (%p108) target = $region51
      $region48: #{tpu_custom_call.1} parent=32 // loop_body
        %s112 = sadd.s32 %s52, %s107
        %s113 = sld [smem:[#allocation6 + %s112]]
        %115 = dma.done [#allocation4], 16
      $region49: #{tpu_custom_call.1} parent=32 // loop_footer
        %s111 = sadd.s32 1, %s107
      $region50: #{tpu_custom_call.1} parent=32 // loop_footer_branch
        %106 = sbr.rel target = $region46
      $region51: #{tpu_custom_call.1} parent=32 // loop_exit
        _
      %v116 = vld [vmem:[#allocation3] sm:$0xff]
      %v117 = vld [vmem:[#allocation2] sm:$0xff]
      %v118 = vld [vmem:[#allocation2 + $0x8] sm:$0xff]
      %v119 = vld [vmem:[#allocation2 + $0x10] sm:$0xff]
      %v120 = vld [vmem:[#allocation2 + $0x18] sm:$0xff]
      %v121 = vld [vmem:[#allocation2 + $0x20] sm:$0xff]
      %v122 = vld [vmem:[#allocation2 + $0x28] sm:$0xff]
      %v123 = vld [vmem:[#allocation2 + $0x30] sm:$0xff]
      %v124 = vld [vmem:[#allocation2 + $0x38] sm:$0xff]
      %v125 = vld [vmem:[#allocation2 + $0x40] sm:$0xff]
      %v126 = vld [vmem:[#allocation2 + $0x48] sm:$0xff]
      %v127 = vld [vmem:[#allocation2 + $0x50] sm:$0xff]
      %v128 = vld [vmem:[#allocation2 + $0x58] sm:$0xff]
      %v129 = vld [vmem:[#allocation2 + $0x60] sm:$0xff]
      %v130 = vld [vmem:[#allocation2 + $0x68] sm:$0xff]
      %v131 = vld [vmem:[#allocation2 + $0x70] sm:$0xff]
      %v132 = vld [vmem:[#allocation2 + $0x78] sm:$0xff]
      %133 = vmatprep.subr.mxu0 0.0
      %134 = vmatpush1.msra.mxu0 %v117
      %135 = vmatprep.subr.mxu0 0.0
      %136 = vmatpush1.msra.mxu0 %v118
      %137 = vmatprep.subr.mxu0 0.0
      %138 = vmatpush1.msra.mxu0 %v119
      %139 = vmatprep.subr.mxu0 0.0
      %140 = vmatpush1.msra.mxu0 %v120
      %141 = vmatprep.subr.mxu0 0.0
      %142 = vmatpush1.msra.mxu0 %v121
      %143 = vmatprep.subr.mxu0 0.0
      %144 = vmatpush1.msra.mxu0 %v122
      %145 = vmatprep.subr.mxu0 0.0
      %146 = vmatpush1.msra.mxu0 %v123
      %147 = vmatprep.subr.mxu0 0.0
      %148 = vmatpush1.msra.mxu0 %v124
      %149 = vmatprep.subr.mxu0 0.0
      %150 = vmatpush1.msra.mxu0 %v125
      %151 = vmatprep.subr.mxu0 0.0
      %152 = vmatpush1.msra.mxu0 %v126
      %153 = vmatprep.subr.mxu0 0.0
      %154 = vmatpush1.msra.mxu0 %v127
      %155 = vmatprep.subr.mxu0 0.0
      %156 = vmatpush1.msra.mxu0 %v128
      %157 = vmatprep.subr.mxu0 0.0
      %158 = vmatpush1.msra.mxu0 %v129
      %159 = vmatprep.subr.mxu0 0.0
      %160 = vmatpush1.msra.mxu0 %v130
      %161 = vmatprep.subr.mxu0 0.0
      %162 = vmatpush1.msra.mxu0 %v131
      %163 = vmatprep.subr.mxu0 0.0
      %164 = vmatpush1.msra.mxu0 %v132
      %165 = vmatprep.subr.mxu0 0.0
      %166 = vmatpush1.msra.mxu0 0.0
      %167 = vmatprep.subr.mxu0 0.0
      %168 = vmatpush1.msra.mxu0 0.0
      %169 = vmatprep.subr.mxu0 0.0
      %170 = vmatpush1.msra.mxu0 0.0
      %171 = vmatprep.subr.mxu0 0.0
      %172 = vmatpush1.msra.mxu0 0.0
      %173 = vmatprep.subr.mxu0 0.0
      %174 = vmatpush1.msra.mxu0 0.0
      %175 = vmatprep.subr.mxu0 0.0
      %176 = vmatpush1.msra.mxu0 0.0
      %177 = vmatprep.subr.mxu0 0.0
      %178 = vmatpush1.msra.mxu0 0.0
      %179 = vmatprep.subr.mxu0 0.0
      %180 = vmatpush1.msra.mxu0 0.0
      %181 = vmatprep.subr.mxu0 0.0
      %182 = vmatpush1.msra.mxu0 0.0
      %183 = vmatprep.subr.mxu0 0.0
      %184 = vmatpush1.msra.mxu0 0.0
      %185 = vmatprep.subr.mxu0 0.0
      %186 = vmatpush1.msra.mxu0 0.0
      %187 = vmatprep.subr.mxu0 0.0
      %188 = vmatpush1.msra.mxu0 0.0
      %189 = vmatprep.subr.mxu0 0.0
      %190 = vmatpush1.msra.mxu0 0.0
      %191 = vmatprep.subr.mxu0 0.0
      %192 = vmatpush1.msra.mxu0 0.0
      %193 = vmatprep.subr.mxu0 0.0
      %194 = vmatpush1.msra.mxu0 0.0
      %195 = vmatprep.subr.mxu0 0.0
      %196 = vmatpush1.msra.mxu0 0.0
      %197 = vmatprep.mubr.f32.mxu0 0.0
      %198 = vmatmul.mubr.f32.gmra.mrb[0].mxu0 %v105
      %v199 = vpop.f32.mrb[0].mxu0
      %v200 = vadd.f32 0.0, %v199
      %v201 = vpop.f32.mrb[0].mxu0
      %202 = vdwg.mxu0
      %v203 = vadd.f32 %v116, %v200
      %204 = vst [vmem:[#allocation3] sm:$0xff] %v203
    $region33: #{tpu_custom_call.1} parent=1 // pred_fallthru
      _
    // Predicated region
    $region52: #{tpu_custom_call.1} parent=1 // pred_check
      %p205 = pneg %p47
    $region53: #{tpu_custom_call.1} parent=1 // pred_check_branch
      %207 = sbr.rel (%p205) target = $region55
    $region54: #{tpu_custom_call.1} parent=1 // pred_region
      %v208 = vld [vmem:[#allocation3] sm:$0xff]
      %v209 = vld [vmem:[#allocation9] sm:$0xff]
      %v210 = vld [vmem:[#allocation9 + $0x8] sm:$0xff]
      %v211 = vld [vmem:[#allocation9 + $0x10] sm:$0xff]
      %v212 = vld [vmem:[#allocation9 + $0x18] sm:$0xff]
      %v213 = vld [vmem:[#allocation9 + $0x20] sm:$0xff]
      %v214 = vld [vmem:[#allocation9 + $0x28] sm:$0xff]
      %v215 = vld [vmem:[#allocation9 + $0x30] sm:$0xff]
      %v216 = vld [vmem:[#allocation9 + $0x38] sm:$0xff]
      %v217 = vld [vmem:[#allocation9 + $0x40] sm:$0xff]
      %v218 = vld [vmem:[#allocation9 + $0x48] sm:$0xff]
      %v219 = vld [vmem:[#allocation9 + $0x50] sm:$0xff]
      %v220 = vld [vmem:[#allocation9 + $0x58] sm:$0xff]
      %v221 = vld [vmem:[#allocation9 + $0x60] sm:$0xff]
      %v222 = vld [vmem:[#allocation9 + $0x68] sm:$0xff]
      %v223 = vld [vmem:[#allocation9 + $0x70] sm:$0xff]
      %v224 = vld [vmem:[#allocation9 + $0x78] sm:$0xff]
      %v225 = vld [vmem:[%s8] sm:$0x1]
      %v227 = vlaneseq
      %v228 = vshrl.u32 %v227, 7
      %v229 = vsub.s32 0, %v228
      %v230 = vrot.slane %v225, %v229
      %232 = vmatprep.subr.mxu0 0.0
      %233 = vmatpush1.msra.mxu0 %v209
      %234 = vmatprep.subr.mxu0 0.0
      %235 = vmatpush1.msra.mxu0 %v210
      %236 = vmatprep.subr.mxu0 0.0
      %237 = vmatpush1.msra.mxu0 %v211
      %238 = vmatprep.subr.mxu0 0.0
      %239 = vmatpush1.msra.mxu0 %v212
      %240 = vmatprep.subr.mxu0 0.0
      %241 = vmatpush1.msra.mxu0 %v213
      %242 = vmatprep.subr.mxu0 0.0
      %243 = vmatpush1.msra.mxu0 %v214
      %244 = vmatprep.subr.mxu0 0.0
      %245 = vmatpush1.msra.mxu0 %v215
      %246 = vmatprep.subr.mxu0 0.0
      %247 = vmatpush1.msra.mxu0 %v216
      %248 = vmatprep.subr.mxu0 0.0
      %249 = vmatpush1.msra.mxu0 %v217
      %250 = vmatprep.subr.mxu0 0.0
      %251 = vmatpush1.msra.mxu0 %v218
      %252 = vmatprep.subr.mxu0 0.0
      %253 = vmatpush1.msra.mxu0 %v219
      %254 = vmatprep.subr.mxu0 0.0
      %255 = vmatpush1.msra.mxu0 %v220
      %256 = vmatprep.subr.mxu0 0.0
      %257 = vmatpush1.msra.mxu0 %v221
      %258 = vmatprep.subr.mxu0 0.0
      %259 = vmatpush1.msra.mxu0 %v222
      %260 = vmatprep.subr.mxu0 0.0
      %261 = vmatpush1.msra.mxu0 %v223
      %262 = vmatprep.subr.mxu0 0.0
      %263 = vmatpush1.msra.mxu0 %v224
      %264 = vmatprep.subr.mxu0 0.0
      %265 = vmatpush1.msra.mxu0 0.0
      %266 = vmatprep.subr.mxu0 0.0
      %267 = vmatpush1.msra.mxu0 0.0
      %268 = vmatprep.subr.mxu0 0.0
      %269 = vmatpush1.msra.mxu0 0.0
      %270 = vmatprep.subr.mxu0 0.0
      %271 = vmatpush1.msra.mxu0 0.0
      %272 = vmatprep.subr.mxu0 0.0
      %273 = vmatpush1.msra.mxu0 0.0
      %274 = vmatprep.subr.mxu0 0.0
      %275 = vmatpush1.msra.mxu0 0.0
      %276 = vmatprep.subr.mxu0 0.0
      %277 = vmatpush1.msra.mxu0 0.0
      %278 = vmatprep.subr.mxu0 0.0
      %279 = vmatpush1.msra.mxu0 0.0
      %280 = vmatprep.subr.mxu0 0.0
      %281 = vmatpush1.msra.mxu0 0.0
      %282 = vmatprep.subr.mxu0 0.0
      %283 = vmatpush1.msra.mxu0 0.0
      %284 = vmatprep.subr.mxu0 0.0
      %285 = vmatpush1.msra.mxu0 0.0
      %286 = vmatprep.subr.mxu0 0.0
      %287 = vmatpush1.msra.mxu0 0.0
      %288 = vmatprep.subr.mxu0 0.0
      %289 = vmatpush1.msra.mxu0 0.0
      %290 = vmatprep.subr.mxu0 0.0
      %291 = vmatpush1.msra.mxu0 0.0
      %292 = vmatprep.subr.mxu0 0.0
      %293 = vmatpush1.msra.mxu0 0.0
      %294 = vmatprep.subr.mxu0 0.0
      %295 = vmatpush1.msra.mxu0 0.0
      %296 = vmatprep.mubr.f32.mxu0 0.0
      %297 = vmatmul.mubr.f32.gmra.mrb[0].mxu0 %v208
      %v298 = vpop.f32.mrb[0].mxu0
      %v299 = vadd.f32 %v230, %v298
      %v300 = vpop.f32.mrb[0].mxu0
      %301 = vdwg.mxu0
      %302 = vst [vmem:[#allocation12] sm:$0xff] %v299
    $region55: #{tpu_custom_call.1} parent=1 // pred_fallthru
      _
    // Predicated region
    $region56: #{tpu_custom_call.1} parent=1 // pred_check
      _
    $region57: #{tpu_custom_call.1} parent=1 // pred_check_branch
      %304 = sbr.rel (0) target = $region59
    $region58: #{tpu_custom_call.1} parent=1 // pred_region
      %s306 = ssub.s32 128, 128
      %307 = vsyncadd [#allocation11], %s306
      %s309 = sshll.u32 [#allocation12], 4
      %s310 = int_to_ptr.vmem [resolvable:$true] %s309
      %312 = dma.vmem_to_hbm [thread:$0]  %s310, 128, %s9, [#allocation11]
    $region59: #{tpu_custom_call.1} parent=1 // pred_fallthru
      _
    // Predicated region
    $region60: #{tpu_custom_call.1} parent=1 // pred_check
      _
    $region61: #{tpu_custom_call.1} parent=1 // pred_check_branch
      %314 = sbr.rel (0) target = $region63
    $region62: #{tpu_custom_call.1} parent=1 // pred_region
      %315 = dma.done [#allocation11], 128
    $region63: #{tpu_custom_call.1} parent=1 // pred_fallthru
      _
    %316 = vsyncpa [#allocation10], 1
    %317 = vsyncpa [#allocation11], 1
  %318 = vsyncmov [#allocation4]
  %s319 = vpop.sfrf %318
  %p320 = scmp.eq.s32.totalorder %s319, 0
  %p321 = pneg %p320
  %323 = shalt.err (%p321)

</llo_original>
